<compile_context>
chip_gen: v6e
topology: v6e:2x2x1
jax: 0.10.0
libtpu: 0.0.40
codegen_flags: <defaults>
</compile_context>

<pallas_src>
import functools
import math

import jax
import jax.numpy as jnp
from jax.experimental import pallas as pl
from jax.experimental.pallas import tpu as pltpu


def _upsample_kernel(x_ref, w_ref, b_ref, out_ref):
    # x_ref:   (TB, 2*C)        row b: [x[b] , x[b-1]] (zero rows at block edges)
    # w_ref:   (2*C, rate*Cp)   [Wf ; Wb]; Wf[ci, r*Cp+co] = W[ci, co, r],
    #                           Wb[ci, r*Cp+co] = W[ci, co, r+rate]
    # b_ref:   (1, rate*Cp)     bias tiled over phases (f32)
    # out_ref: (TB, rate*Cp)    one rate-block of output per row
    acc = jnp.dot(x_ref[...], w_ref[...], preferred_element_type=jnp.float32)
    out_ref[...] = (acc + b_ref[...]).astype(out_ref.dtype)


def _round_up(v, m):
    return ((v + m - 1) // m) * m


def upsample(x_ncl, weight, bias, rate, *,
             compute_dtype=jnp.bfloat16,
             out_dtype=None,
             channels_last_output=False,
             max_rows_per_tile=2048):
    """ConvTranspose1d(dim, dim, 2*rate, stride=rate, padding=1).

    x_ncl: (N, C, L) -> (N, C, (L+1)*rate - 2)  (or (N, L_out, C) if
    channels_last_output=True, which skips the epilogue transpose).

    compute_dtype: dtype of the MXU operands (activations + packed weights).
      Default bfloat16 (native MXU rate, half the input HBM bytes) with f32
      accumulation; pass jnp.float32 for PyTorch-fp32-parity numerics.
    out_dtype: dtype of the kernel output / result (default: x.dtype).
    """
    n, c, l = x_ncl.shape
    k = 2 * rate
    assert weight.shape == (c, c, k) and bias.shape == (c,)

    in_dtype = jnp.dtype(compute_dtype)
    out_dt = jnp.dtype(out_dtype) if out_dtype is not None else jnp.dtype(x_ncl.dtype)
    in_isz, out_isz = in_dtype.itemsize, out_dt.itemsize

    lb = l + 1                    # uncropped output rate-blocks per batch
    rows = n * lb                 # all batches folded into one row axis

    # Lane-dense output: pad Cout so rate*Cp is a multiple of 128 (crop later).
    c_pad = _round_up(c, 128 // math.gcd(rate, 128))
    r_cp = rate * c_pad

    # ---- generation-aware, VMEM-budgeted row tiling (multiples of 32 sublanes) ----
    try:
        vmem_cap = int(pltpu.get_tpu_info().vmem_capacity_bytes)   # 128 MiB v5e/v6e, 64 MiB v7x
    except Exception:
        vmem_cap = 64 * 1024 * 1024                                # conservative fallback
    hard_limit = (vmem_cap * 7) // 8                               # headroom for Mosaic scratch

    bytes_per_row = 2 * (2 * c * in_isz) + 2 * (r_cp * out_isz)    # double-buffered in + out
    const_bytes = 2 * (2 * c * r_cp * in_isz + r_cp * 4)           # Wcat + bias (double-buffered)
    # TODO(synk): single-buffer the constant W/bias (pipeline_mode=pl.Buffered(1))
    # to reclaim const_bytes/2 of VMEM for very large C.
    stream_budget = min(48 * 1024 * 1024, hard_limit - (4 << 20) - const_bytes)
    tb = (max(stream_budget, 0) // bytes_per_row) // 32 * 32
    tb = max(32, min(max_rows_per_tile, tb))
    tb = min(tb, _round_up(rows, 32))
    num_tiles = pl.cdiv(rows, tb)
    if num_tiles == 1 and tb >= 64:
        # Ensure >= 2 "parallel" tiles so v7x can shard across both TensorCores.
        tb = _round_up(pl.cdiv(rows, 2), 32)
        num_tiles = pl.cdiv(rows, tb)
    rows_pad = num_tiles * tb

    vmem_limit = int(min(hard_limit,
                         max(32 * 1024 * 1024,
                             const_bytes + tb * bytes_per_row + (2 << 20))))

    # ---- parameter packing (tiny, one-time) ----
    w_t = jnp.transpose(weight, (0, 2, 1))                         # (Cin, K, Cout)
    pad_co = ((0, 0), (0, 0), (0, c_pad - c))
    w_f = jnp.pad(w_t[:, :rate, :], pad_co).reshape(c, r_cp)       # front taps k in [0, rate)
    w_b = jnp.pad(w_t[:, rate:, :], pad_co).reshape(c, r_cp)       # back  taps k in [rate, 2*rate)
    w_cat = jnp.concatenate([w_f, w_b], axis=0).astype(in_dtype)   # (2C, rate*Cp)
    b_tiled = jnp.tile(jnp.pad(bias, (0, c_pad - c)), rate).reshape(1, r_cp).astype(jnp.float32)

    # ---- fused, shifted, zero-padded channels-last input (rows, 2C) ----
    # lanes [0, C)  : x[n, b]     (zero when b == L)   -> pairs with Wf
    # lanes [C, 2C) : x[n, b - 1] (zero when b == 0)   -> pairs with Wb
    x_nlc = jnp.transpose(x_ncl, (0, 2, 1)).astype(in_dtype)       # (N, L, C)
    x_front = jnp.pad(x_nlc, ((0, 0), (0, 1), (0, 0)))             # (N, L+1, C)
    x_back = jnp.pad(x_nlc, ((0, 0), (1, 0), (0, 0)))              # (N, L+1, C)
    x_cat = jnp.concatenate([x_front, x_back], axis=-1).reshape(rows, 2 * c)
    if rows_pad > rows:
        x_cat = jnp.pad(x_cat, ((0, rows_pad - rows), (0, 0)))

    out_flat = pl.pallas_call(
        _upsample_kernel,
        out_shape=jax.ShapeDtypeStruct((rows_pad, r_cp), out_dt),
        grid=(num_tiles,),
        in_specs=[
            pl.BlockSpec((tb, 2 * c), lambda j: (j, 0)),     # fused input tile
            pl.BlockSpec((2 * c, r_cp), lambda j: (0, 0)),   # [Wf ; Wb] (constant index map)
            pl.BlockSpec((1, r_cp), lambda j: (0, 0)),       # tiled bias
        ],
        out_specs=pl.BlockSpec((tb, r_cp), lambda j: (j, 0)),
        compiler_params=pltpu.CompilerParams(
            dimension_semantics=("parallel",),
            vmem_limit_bytes=vmem_limit,
        ),
    )(x_cat, w_cat, b_tiled)

    # ---- ungroup phases, crop the Cout padding and padding=1, back to NCL ----
    full = out_flat[:rows].reshape(n, lb, rate, c_pad)[:, :, :, :c]
    full = full.reshape(n, lb * rate, c)                    # (N, (L+1)*rate, C)
    out_nlc = full[:, 1:-1, :]                              # L_out = (L+1)*rate - 2
    if channels_last_output:
        return out_nlc                                      # (N, L_out, C), skips transpose
    return jnp.transpose(out_nlc, (0, 2, 1))                # (N, C, L_out)


def reference_conv_transpose1d(x, w, b, stride, padding):
    """Direct scatter-add reference matching torch.nn.ConvTranspose1d semantics."""
    n, cin, l = x.shape
    _, cout, k = w.shape
    l_full = (l - 1) * stride + k
    full = jnp.zeros((n, cout, l_full), jnp.float32)
    for li in range(l):
        contrib = jnp.einsum("ni,iok->nok", x[:, :, li], w)          # (N, Cout, K)
        full = full.at[:, :, li * stride: li * stride + k].add(contrib)
    return full[:, :, padding: l_full - padding] + b[None, :, None]


if __name__ == "__main__":
    key = jax.random.PRNGKey(0)
    dim, rate = 16, 2            # Upsample(dim=16, rate=2)
    batch, length = 2, 8

    kx, kw, kb = jax.random.split(key, 3)
    x = jax.random.normal(kx, (batch, dim, length), jnp.float32)                 # NCL
    weight = jax.random.normal(kw, (dim, dim, 2 * rate), jnp.float32) * 0.1      # (Cin, Cout, K)
    bias = jax.random.normal(kb, (dim,), jnp.float32) * 0.1

    ref = reference_conv_transpose1d(x, weight, bias, stride=rate, padding=1)
    l_out = (length + 1) * rate - 2
    assert ref.shape == (batch, dim, l_out)

    # Exact-semantics path (f32 MXU operands) -- tight tolerance.
    up_f32 = jax.jit(functools.partial(upsample, rate=rate, compute_dtype=jnp.float32))
    out_f32 = jax.block_until_ready(up_f32(x, weight, bias))
    assert out_f32.shape == ref.shape, (out_f32.shape, ref.shape)
    assert out_f32.dtype == x.dtype
    assert jnp.allclose(out_f32, ref, rtol=1e-4, atol=1e-4)

    # Default fast path (bf16 operands, f32 accumulation) -- bf16-level tolerance.
    up_fast = jax.jit(functools.partial(upsample, rate=rate))
    out_fast = jax.block_until_ready(up_fast(x, weight, bias))
    assert out_fast.shape == ref.shape, (out_fast.shape, ref.shape)
    assert jnp.allclose(out_fast, ref, rtol=5e-2, atol=5e-2)

    print("KERNEL_OK")
</pallas_src>

<mosaic_0001>
module attributes {stable_mosaic.version = 11 : i64} {
  func.func @_upsample_kernel(%arg0: i32, %arg1: memref<32x32xf32, #tpu.memory_space<vmem>>, %arg2: memref<32x128xf32, #tpu.memory_space<vmem>>, %arg3: memref<1x128xf32, #tpu.memory_space<vmem>>, %arg4: memref<32x128xf32, #tpu.memory_space<vmem>>) attributes {dimension_semantics = [#tpu.dimension_semantics<parallel>], iteration_bounds = array<i64: 1>, scalar_prefetch = 0 : i64, scratch_operands = 0 : i64, tpu.core_type = #tpu.core_type<tc>, window_params = [{transform_indices = @transform_0, window_bounds = array<i64: 32, 32>}, {pipeline_mode = #tpu.pipeline_mode<synchronous>, transform_indices = @transform_1, window_bounds = array<i64: 32, 128>}, {pipeline_mode = #tpu.pipeline_mode<synchronous>, transform_indices = @transform_2, window_bounds = array<i64: 1, 128>}, {transform_indices = @transform_3, window_bounds = array<i64: 32, 128>}]} {
    %c0 = arith.constant 0 : index
    %c0_0 = arith.constant 0 : index
    %0 = vector.load %arg1[%c0, %c0_0] : memref<32x32xf32, #tpu.memory_space<vmem>>, vector<32x32xf32>
    %c0_1 = arith.constant 0 : index
    %c0_2 = arith.constant 0 : index
    %1 = vector.load %arg2[%c0_1, %c0_2] : memref<32x128xf32, #tpu.memory_space<vmem>>, vector<32x128xf32>
    %cst = arith.constant dense<0.000000e+00> : vector<32x128xf32>
    %2 = tpu.matmul %0, %1, %cst {dimension_numbers = #tpu.dot_dimension_numbers<[1], [0], [0], [1], [0, 0, 1, 1], [], []>} : vector<32x32xf32>, vector<32x128xf32>, vector<32x128xf32> -> vector<32x128xf32>
    %c0_3 = arith.constant 0 : index
    %c0_4 = arith.constant 0 : index
    %3 = vector.load %arg3[%c0_3, %c0_4] : memref<1x128xf32, #tpu.memory_space<vmem>>, vector<1x128xf32>
    %4 = vector.broadcast %3 : vector<1x128xf32> to vector<32x128xf32>
    %5 = arith.addf %2, %4 : vector<32x128xf32>
    %c0_5 = arith.constant 0 : index
    %c0_6 = arith.constant 0 : index
    %6 = vector.load %arg4[%c0_5, %c0_6] : memref<32x128xf32, #tpu.memory_space<vmem>>, vector<32x128xf32>
    tpu.vector_store %arg4[%c0_5, %c0_6], %5 {strides = array<i32>} : memref<32x128xf32, #tpu.memory_space<vmem>>, vector<32x128xf32>,
    return
  }
  func.func @transform_0(%arg0: i32) -> (i32, i32) {
    %c0_i32 = arith.constant 0 : i32
    %c0_i32_0 = arith.constant 0 : i32
    return %arg0, %c0_i32 : i32, i32
  }
  func.func @transform_1(%arg0: i32) -> (i32, i32) {
    %c0_i32 = arith.constant 0 : i32
    %c0_i32_0 = arith.constant 0 : i32
    %c0_i32_1 = arith.constant 0 : i32
    return %c0_i32, %c0_i32_0 : i32, i32
  }
  func.func @transform_2(%arg0: i32) -> (i32, i32) {
    %c0_i32 = arith.constant 0 : i32
    %c0_i32_0 = arith.constant 0 : i32
    %c0_i32_1 = arith.constant 0 : i32
    return %c0_i32, %c0_i32_0 : i32, i32
  }
  func.func @transform_3(%arg0: i32) -> (i32, i32) {
    %c0_i32 = arith.constant 0 : i32
    %c0_i32_0 = arith.constant 0 : i32
    return %arg0, %c0_i32 : i32, i32
  }
}

</mosaic_0001>

<llo_original>
// kernel: tile.8
$region0: #{tile.8}
  #allocation0 [shape = 's32[1]{0}', space=sflag, size = 0x4, scoped, tag = 'scoped memory for tile.8']
  %s0 = inlined_call_operand.vmem [shape: f32[64], index: 0, kind: input, shape index: {}]
  %s1 = inlined_call_operand.vmem [shape: f32[2,64], index: 1, kind: output, shape index: {}]
  // Predicated region
  $region2: #{tile.8} parent=0 // pred_check
    _
  $region3: #{tile.8} parent=0 // pred_check_branch
    %3 = sbr.rel (0) target = $region5
  $region4: #{tile.8} parent=0 // pred_region
    _
  $region5: #{tile.8} parent=0 // pred_fallthru
    _
  %v4 = vld [vmem:[%s0] ss:$0 sm:$0xff]
  %5 = vst [vmem:[%s1] sm:$0x3] %v4

// kernel: tile.9
$region0: #{tile.9}
  %s0 = inlined_call_operand.vmem [shape: f32[2,64], index: 0, kind: input, shape index: {}]
  %s1 = inlined_call_operand.vmem [shape: f32[1,128], index: 1, kind: output, shape index: {}]
  $region1: #{tile.9} parent=0
    #allocation0 [shape = 'u8[4096]{0}', space=vmem, size = 0x1000, scoped, tag = 'scoped mem for output reshape']
    #allocation1 [shape = 'u8[4096]{0}', space=vmem, size = 0x1000, scoped, tag = 'scoped mem for input reshape']
    %s3 = sshll.u32 1, 2
    %s4 = ssub.s32 %s3, 1
    %v5 = vld [vmem:[%s0] sm:%s4]
    %6 = vst [vmem:[#allocation1] sm:%s4] %v5
    %v7 = vld [vmem:[#allocation1] sm:$0x1]
    %vm8 = vcmask 523264
    %9 = vst.msk [vmem:[#allocation0] sm:$0x1] %vm8, %v7
    %s10 = scalar_lea.vmem [#allocation1], 1
    %v11 = vld [vmem:[%s10] sm:$0x1]
    %12 = vrot.lane.b32.xlu0 %v11, 64
    %v13 = vpop.permute.xlu0 %12
    %vm14 = vcmask 1048064
    %15 = vst.msk [vmem:[#allocation0] sm:$0x1] %vm14, %v13
    %s17 = sshll.u32 1, 1
    %s18 = ssub.s32 %s17, 1
    %v20 = vld [vmem:[#allocation0] sm:%s18]
    %s21 = sshll.u32 1, 1
    %s22 = ssub.s32 %s21, 1
    %23 = vst [vmem:[%s1] sm:%s22] %v20

// kernel: upsample.1
$region0: #{upsample.1}
  #allocation0 [shape = 'u32[]', space=smem, size = 0x4, offset = 0x4, fixed_abs, tag = 'smem constant byte address 0x4 - core index']
  #allocation1 [shape = 'u32[144,128]{1,0:T(1,128)}', space=vmem, size = 0x12000, scoped, tag = 'internal scratch']
  %s0 = inlined_call_operand.vmem [shape: f32[32,32], index: 0, kind: input, shape index: {}]
  %s1 = inlined_call_operand.vmem [shape: f32[32,128], index: 1, kind: input, shape index: {}]
  %s2 = inlined_call_operand.vmem [shape: f32[1,128], index: 2, kind: input, shape index: {}]
  %s3 = inlined_call_operand.vmem [shape: f32[32,128], index: 3, kind: output, shape index: {}]
  %s4 = sld [smem:[#allocation0]]
  $region22: #{upsample.1} parent=0
    _
  %s6 = ssub.s32 1, %s4
  %s7 = scalar_select 0, %s6, %s4
  // Predicated region
  $region2: #{upsample.1} parent=0 // pred_check
    _
  $region3: #{upsample.1} parent=0 // pred_check_branch
    %9 = sbr.rel (0) target = $region5
  $region4: #{upsample.1} parent=0 // pred_region
    _
  $region5: #{upsample.1} parent=0 // pred_fallthru
    _
  // Predicated region
  $region6: #{upsample.1} parent=0 // pred_check
    _
  $region7: #{upsample.1} parent=0 // pred_check_branch
    %11 = sbr.rel (0) target = $region9
  $region8: #{upsample.1} parent=0 // pred_region
    _
  $region9: #{upsample.1} parent=0 // pred_fallthru
    _
  // Predicated region
  $region10: #{upsample.1} parent=0 // pred_check
    _
  $region11: #{upsample.1} parent=0 // pred_check_branch
    %13 = sbr.rel (0) target = $region13
  $region12: #{upsample.1} parent=0 // pred_region
    _
  $region13: #{upsample.1} parent=0 // pred_fallthru
    _
  %v14 = vld [vmem:[%s0] sm:$0xff]
  %v15 = vld [vmem:[%s0 + $0x8] sm:$0xff]
  %v16 = vld [vmem:[%s0 + $0x10] sm:$0xff]
  %v17 = vld [vmem:[%s0 + $0x18] sm:$0xff]
  %v18 = vld [vmem:[%s1] sm:$0xff]
  %v19 = vld [vmem:[%s1 + $0x8] sm:$0xff]
  %v20 = vld [vmem:[%s1 + $0x10] sm:$0xff]
  %v21 = vld [vmem:[%s1 + $0x18] sm:$0xff]
  %v22 = vld [vmem:[%s2] sm:$0x1]
  %v24 = vlaneseq
  %v25 = vshrl.u32 %v24, 7
  %v26 = vsub.s32 0, %v25
  %v27 = vrot.slane %v22, %v26
  %vm29 = vcmask 261120
  %v31 = vsel %vm29, %v14, 0
  %v34 = vsel %vm29, %v15, 0
  %v37 = vsel %vm29, %v16, 0
  %v40 = vsel %vm29, %v17, 0
  %42 = vmatprep.subr.mxu0 0.0
  %43 = vmatpush1.msra.mxu0 0.0
  %44 = vmatprep.subr.mxu0 0.0
  %45 = vmatpush1.msra.mxu0 0.0
  %46 = vmatprep.subr.mxu0 0.0
  %47 = vmatpush1.msra.mxu0 0.0
  %48 = vmatprep.subr.mxu0 0.0
  %49 = vmatpush1.msra.mxu0 0.0
  %50 = vmatprep.subr.mxu0 0.0
  %51 = vmatpush1.msra.mxu0 0.0
  %52 = vmatprep.subr.mxu0 0.0
  %53 = vmatpush1.msra.mxu0 0.0
  %54 = vmatprep.subr.mxu0 0.0
  %55 = vmatpush1.msra.mxu0 0.0
  %56 = vmatprep.subr.mxu0 0.0
  %57 = vmatpush1.msra.mxu0 0.0
  %58 = vmatprep.subr.mxu0 0.0
  %59 = vmatpush1.msra.mxu0 0.0
  %60 = vmatprep.subr.mxu0 0.0
  %61 = vmatpush1.msra.mxu0 0.0
  %62 = vmatprep.subr.mxu0 0.0
  %63 = vmatpush1.msra.mxu0 0.0
  %64 = vmatprep.subr.mxu0 0.0
  %65 = vmatpush1.msra.mxu0 0.0
  %66 = vmatprep.subr.mxu0 0.0
  %67 = vmatpush1.msra.mxu0 %v21
  %68 = vmatprep.subr.mxu0 0.0
  %69 = vmatpush1.msra.mxu0 %v20
  %70 = vmatprep.subr.mxu0 0.0
  %71 = vmatpush1.msra.mxu0 %v19
  %72 = vmatprep.subr.mxu0 0.0
  %73 = vmatpush1.msra.mxu0 %v18
  %74 = vmatprep.subr.mxu0 0.0
  %75 = vmatpush2.msra.mxu0 0.0
  %76 = vmatprep.subr.mxu0 0.0
  %77 = vmatpush2.msra.mxu0 0.0
  %78 = vmatprep.subr.mxu0 0.0
  %79 = vmatpush2.msra.mxu0 0.0
  %80 = vmatprep.subr.mxu0 0.0
  %81 = vmatpush2.msra.mxu0 0.0
  %82 = vmatprep.subr.mxu0 0.0
  %83 = vmatpush2.msra.mxu0 0.0
  %84 = vmatprep.subr.mxu0 0.0
  %85 = vmatpush2.msra.mxu0 0.0
  %86 = vmatprep.subr.mxu0 0.0
  %87 = vmatpush2.msra.mxu0 0.0
  %88 = vmatprep.subr.mxu0 0.0
  %89 = vmatpush2.msra.mxu0 0.0
  %90 = vmatprep.subr.mxu0 0.0
  %91 = vmatpush2.msra.mxu0 0.0
  %92 = vmatprep.subr.mxu0 0.0
  %93 = vmatpush2.msra.mxu0 0.0
  %94 = vmatprep.subr.mxu0 0.0
  %95 = vmatpush2.msra.mxu0 0.0
  %96 = vmatprep.subr.mxu0 0.0
  %97 = vmatpush2.msra.mxu0 0.0
  %98 = vmatprep.subr.mxu0 0.0
  %99 = vmatpush2.msra.mxu0 0.0
  %100 = vmatprep.subr.mxu0 0.0
  %101 = vmatpush2.msra.mxu0 0.0
  %102 = vmatprep.subr.mxu0 0.0
  %103 = vmatpush2.msra.mxu0 0.0
  %104 = vmatprep.subr.mxu0 0.0
  %105 = vmatpush2.msra.mxu0 0.0
  %106 = vmatprep.mubr.f32.mxu0 0.0
  %107 = vmatmul.mubr.f32.gmra.mxu0 %v31
  %v108 = vpop.f32.mrf.mxu0
  %v109 = vadd.f32 %v27, %v108
  %v110 = vpop.f32.mrf.mxu0
  %111 = vmatprep.mubr.f32.mxu0 0.0
  %112 = vmatmul.mubr.f32.gmra.mxu0 %v34
  %v113 = vpop.f32.mrf.mxu0
  %v114 = vadd.f32 %v27, %v113
  %v115 = vpop.f32.mrf.mxu0
  %116 = vmatprep.mubr.f32.mxu0 0.0
  %117 = vmatmul.mubr.f32.gmra.mxu0 %v37
  %v118 = vpop.f32.mrf.mxu0
  %v119 = vadd.f32 %v27, %v118
  %v120 = vpop.f32.mrf.mxu0
  %121 = vmatprep.mubr.f32.mxu0 0.0
  %122 = vmatmul.mubr.f32.gmra.mxu0 %v40
  %v123 = vpop.f32.mrf.mxu0
  %v124 = vadd.f32 %v27, %v123
  %v125 = vpop.f32.mrf.mxu0
  %126 = vdwg.mxu0
  %127 = vst [vmem:[%s3] sm:$0xff] %v109
  %128 = vst [vmem:[%s3 + $0x8] sm:$0xff] %v114
  %129 = vst [vmem:[%s3 + $0x10] sm:$0xff] %v119
  %130 = vst [vmem:[%s3 + $0x18] sm:$0xff] %v124
  // Predicated region
  $region14: #{upsample.1} parent=0 // pred_check
    _
  $region15: #{upsample.1} parent=0 // pred_check_branch
    %132 = sbr.rel (0) target = $region17
  $region16: #{upsample.1} parent=0 // pred_region
    _
  $region17: #{upsample.1} parent=0 // pred_fallthru
    _
  // Predicated region
  $region18: #{upsample.1} parent=0 // pred_check
    _
  $region19: #{upsample.1} parent=0 // pred_check_branch
    %134 = sbr.rel (0) target = $region21
  $region20: #{upsample.1} parent=0 // pred_region
    _
  $region21: #{upsample.1} parent=0 // pred_fallthru
    _

</llo_original>
